<compile_context>
chip_gen: v5e
topology: v5e:2x2
jax: 0.10.0
libtpu: 0.0.40
codegen_flags: <defaults>
</compile_context>

<pallas_src>
import math

import jax
import jax.numpy as jnp
from jax import lax
from jax.experimental import pallas as pl
from jax.experimental.pallas import tpu as pltpu


_LANE = 128
_MIN_TILE_W = 512            # below this, extra grid steps are pure overhead
_MAX_TILE_W = 32768          # hard cap on per-step flat width (vreg/VMEM sanity)
_VMEM_BUDGET = 16 << 20      # per-step pipeline footprint target (v7x-safe)


def _round_up(n, m):
    return ((n + m - 1) // m) * m


def _pick_tiling(B, L_pad, col_bytes):
    """Choose (B_pad, W, N_flat, num_tiles) for the flat (C, B_pad*L_pad) layout."""
    flat = B * L_pad
    w_cap = max(_LANE, min(_MAX_TILE_W, _VMEM_BUDGET // max(col_bytes, 1)))

    candidates = []

    # Option 1: a single lane-padded tile (minimal padding, one grid step).
    if flat <= w_cap:
        n_flat = _round_up(flat, _LANE)
        candidates.append(((n_flat - flat, 1, 1), (B, n_flat, n_flat, 1)))

    # Option 2: batch-tiled grid; TB*L_pad must be a multiple of 128 so every
    # block (and every output store) is lane-dense and unmasked.
    step = _LANE // math.gcd(L_pad, _LANE)
    if step * L_pad <= w_cap:
        tb_cap = max(step, (w_cap // L_pad) // step * step)
        best_key, best_cfg = None, None
        for tb in range(step, tb_cap + 1, step):
            b_pad = _round_up(B, tb)
            n_tiles = b_pad // tb
            waste = (b_pad - B) * L_pad          # phantom padded-batch columns
            multi_ok = n_tiles >= 2 and tb * L_pad >= _MIN_TILE_W
            key = (waste, 0 if multi_ok else 1, n_tiles)
            if best_key is None or key < best_key:
                best_key = key
                best_cfg = (b_pad, tb * L_pad, b_pad * L_pad, n_tiles)
        candidates.append((best_key, best_cfg))

    if not candidates:
        # Single padded window wider than the per-step VMEM cap: one huge tile.
        # TODO(synk): L-axis grid with halo blocks for very long sequences.
        n_flat = _round_up(flat, _LANE)
        return B, n_flat, n_flat, 1

    # Least padded-column waste, then prefer >=2 tiles (v7x megacore), then
    # fewer grid steps.
    candidates.sort(key=lambda c: c[0])
    return candidates[0][1]


def custom_conv_pallas(x, masks, weight, bias, dilation, *, compute_dtype=None):
    """Masked 'same' conv1d matching PyTorch CustomConv.forward.

    x:      (B, C_in, L)   float32
    masks:  (B, 1, L)      float32 (0/1)
    weight: (C_out, C_in, K)
    bias:   (C_out,)
    """
    B, C_in, L = x.shape
    C_out, _, K = weight.shape
    dilation = int(dilation)
    out_dtype = x.dtype
    cdt = jnp.dtype(compute_dtype) if compute_dtype is not None else jnp.dtype(x.dtype)
    mask_dtype = jnp.dtype(jnp.bfloat16)      # 0/1 exact, 2x smaller mask stream

    # 'same' padding (stride=1), PyTorch convention: extra pad goes on the right.
    total_pad = dilation * (K - 1)
    pad_l = total_pad // 2
    pad_r = total_pad - pad_l
    L_pad = L + total_pad

    # ---- adaptive batch tiling (VMEM-budget driven) ---------------------------
    isz_c = cdt.itemsize
    isz_o = jnp.dtype(out_dtype).itemsize
    # per-flat-column VMEM bytes: double-buffered x & mask in, double-buffered
    # out, staged-x scratch, plus live f32 intermediates (xm + acc).
    col_bytes = (2 * (C_in * isz_c + mask_dtype.itemsize)
                 + 2 * C_out * isz_o
                 + C_in * isz_c
                 + (C_in + C_out) * 4)
    B_pad, W, N_flat, num_tiles = _pick_tiling(B, L_pad, col_bytes)

    # ---- one wrapper-side relayout: (B, C_in, L) -> (C_in, N_flat) -------------
    # Each batch window is L_pad wide; the zero 'same' padding between windows
    # doubles as the guard band, so tap shifts never bleed across batches.
    x_t = jnp.transpose(x, (1, 0, 2))                                # (C_in, B, L)
    x_t = jnp.pad(x_t, ((0, 0), (0, B_pad - B), (pad_l, pad_r)))     # (C_in, B_pad, L_pad)
    x_f = x_t.reshape(C_in, B_pad * L_pad)
    m_t = jnp.transpose(masks, (1, 0, 2))                            # (1, B, L)
    m_t = jnp.pad(m_t, ((0, 0), (0, B_pad - B), (pad_l, pad_r)))
    m_f = m_t.reshape(1, B_pad * L_pad)
    if N_flat > B_pad * L_pad:                     # only the single-tile path
        x_f = jnp.pad(x_f, ((0, 0), (0, N_flat - B_pad * L_pad)))
        m_f = jnp.pad(m_f, ((0, 0), (0, N_flat - B_pad * L_pad)))
    x_f = x_f.astype(cdt)
    m_f = m_f.astype(mask_dtype)

    w_t = jnp.transpose(weight, (2, 0, 1)).astype(cdt)               # (K, C_out, C_in)
    b_col = bias.reshape(C_out, 1).astype(jnp.float32)

    # Lane-extended staging scratch: masked x sits at a 128-aligned offset so its
    # store is an unmasked vst; taps read shifted (C_in, W) views of it.
    margin_l = _round_up(pad_l, _LANE) if pad_l else 0
    margin_r = _round_up(pad_r, _LANE) if pad_r else 0
    Wx = margin_l + W + margin_r

    def kernel(x_ref, m_ref, w_ref, b_ref, o_ref, xs_ref):
        m = m_ref[...]                                       # (1, W) bf16
        xm = x_ref[...] * m.astype(x_ref.dtype)              # fused input masking

        # Re-zero only the tiny margins every step (grid axis is "parallel", so
        # no step-0-only init), then one aligned full-width store of masked x.
        if margin_l:
            xs_ref[:, pl.ds(0, margin_l)] = jnp.zeros((C_in, margin_l), cdt)
        if margin_r:
            xs_ref[:, pl.ds(margin_l + W, margin_r)] = jnp.zeros((C_in, margin_r), cdt)
        xs_ref[:, pl.ds(margin_l, W)] = xm

        # K accumulating MXU dots on shifted views; output column j gets
        # sum_k sum_c w[co,c,k] * xm[c, j + k*dilation - pad_l] (f32 acc).
        acc = None
        for k in range(K):                                   # static unroll, K small
            start = margin_l - pad_l + k * dilation
            xk = xs_ref[:, pl.ds(start, W)]                  # (C_in, W)
            part = jnp.dot(w_ref[k], xk, preferred_element_type=jnp.float32)
            acc = part if acc is None else acc + part

        out = (acc + b_ref[...]) * m.astype(jnp.float32)     # bias + output mask
        o_ref[...] = out.astype(o_ref.dtype)                 # lane-dense unmasked vst

    flops = 2 * K * C_in * C_out * B * L
    bytes_accessed = (C_in * N_flat * isz_c + N_flat * mask_dtype.itemsize
                      + C_out * N_flat * isz_o + K * C_out * C_in * isz_c + C_out * 4)
    per_step = (col_bytes * W + C_in * (margin_l + margin_r) * isz_c
                + K * C_out * C_in * isz_c + C_out * 4)
    vmem_limit = int(min(96 << 20, max(24 << 20, 2 * per_step)))

    out_f = pl.pallas_call(
        kernel,
        out_shape=jax.ShapeDtypeStruct((C_out, N_flat), out_dtype),
        grid_spec=pltpu.PrefetchScalarGridSpec(
            num_scalar_prefetch=0,
            grid=(num_tiles,),
            in_specs=[
                pl.BlockSpec((C_in, W), lambda i: (0, i)),
                pl.BlockSpec((1, W), lambda i: (0, i)),
                pl.BlockSpec((K, C_out, C_in), lambda i: (0, 0, 0)),
                pl.BlockSpec((C_out, 1), lambda i: (0, 0)),
            ],
            out_specs=pl.BlockSpec((C_out, W), lambda i: (0, i)),
            scratch_shapes=[pltpu.VMEM((C_in, Wx), cdt)],
        ),
        compiler_params=pltpu.CompilerParams(
            dimension_semantics=("parallel",),
            vmem_limit_bytes=vmem_limit),
        cost_estimate=pl.CostEstimate(flops=flops, transcendentals=0,
                                      bytes_accessed=bytes_accessed),
    )(x_f, m_f, w_t, b_col)

    # Undo the flat layout: valid output lives at window offsets [pad_l, pad_l+L).
    out = out_f[:, :B_pad * L_pad].reshape(C_out, B_pad, L_pad)
    out = out[:, :B, pad_l:pad_l + L]
    return jnp.transpose(out, (1, 0, 2))


def custom_conv_ref(x, masks, weight, bias, dilation):
    """Pure-JAX reference matching the PyTorch module."""
    C_out, _, K = weight.shape
    total_pad = dilation * (K - 1)
    pad_l = total_pad // 2
    pad_r = total_pad - pad_l
    x_m = x * masks
    y = lax.conv_general_dilated(
        x_m, weight,
        window_strides=(1,),
        padding=[(pad_l, pad_r)],
        rhs_dilation=(dilation,),
        dimension_numbers=("NCH", "OIH", "NCH"),
        precision=lax.Precision.HIGHEST,
    ) + bias.reshape(1, C_out, 1)
    return y * masks


if __name__ == "__main__":
    key = jax.random.PRNGKey(0)

    def run_case(case_key, B, C_in, C_out, L, K, dilation):
        kx, kw, kb, kl = jax.random.split(case_key, 4)
        x = jax.random.normal(kx, (B, C_in, L), dtype=jnp.float32)
        # PyTorch-style init: U(-1/sqrt(fan_in), 1/sqrt(fan_in))
        fan_in = C_in * K
        bound = 1.0 / (fan_in ** 0.5)
        weight = jax.random.uniform(kw, (C_out, C_in, K), jnp.float32, -bound, bound)
        bias = jax.random.uniform(kb, (C_out,), jnp.float32, -bound, bound)
        # Masks: 1 for the valid prefix of each sequence, 0 afterwards.
        lens = jax.random.randint(kl, (B,), 1, L + 1)
        pos = jnp.arange(L)[None, None, :]
        masks = (pos < lens[:, None, None]).astype(jnp.float32)     # (B, 1, L)

        out = jax.block_until_ready(custom_conv_pallas(x, masks, weight, bias, dilation))
        ref = custom_conv_ref(x, masks, weight, bias, dilation)
        assert out.shape == (B, C_out, L), (out.shape, (B, C_out, L))
        # Tolerance allows for MXU pass-precision differences vs the XLA conv
        # reference; genuine layout/mask bugs produce O(0.1-1) errors.
        max_err = float(jnp.max(jnp.abs(out - ref)))
        assert jnp.allclose(out, ref, rtol=1e-2, atol=1e-3), \
            f"mismatch vs reference (max abs err {max_err})"

    k1, k2 = jax.random.split(key)
    # Small shapes consistent with the module's forward (single lane-dense tile).
    run_case(k1, B=2, C_in=4, C_out=8, L=16, K=3, dilation=2)
    # Larger batch exercising the batch-tiled (2 grid steps, v7x-friendly) path.
    run_case(k2, B=128, C_in=4, C_out=8, L=16, K=3, dilation=2)

    print("KERNEL_OK")
</pallas_src>

<mosaic_0001>
module attributes {stable_mosaic.version = 11 : i64} {
  func.func @kernel(%arg0: i32, %arg1: memref<4x128xf32, #tpu.memory_space<vmem>>, %arg2: memref<1x128xbf16, #tpu.memory_space<vmem>>, %arg3: memref<3x8x4xf32, #tpu.memory_space<vmem>>, %arg4: memref<8x1xf32, #tpu.memory_space<vmem>>, %arg5: memref<8x128xf32, #tpu.memory_space<vmem>>, %arg6: memref<4x384xf32, #tpu.memory_space<vmem>>) attributes {dimension_semantics = [#tpu.dimension_semantics<parallel>], iteration_bounds = array<i64: 1>, scalar_prefetch = 0 : i64, scratch_operands = 1 : i64, tpu.core_type = #tpu.core_type<tc>, window_params = [{transform_indices = @transform_0, window_bounds = array<i64: 4, 128>}, {transform_indices = @transform_1, window_bounds = array<i64: 1, 128>}, {pipeline_mode = #tpu.pipeline_mode<synchronous>, transform_indices = @transform_2, window_bounds = array<i64: 3, 8, 4>}, {pipeline_mode = #tpu.pipeline_mode<synchronous>, transform_indices = @transform_3, window_bounds = array<i64: 8, 1>}, {transform_indices = @transform_4, window_bounds = array<i64: 8, 128>}]} {
    %c0 = arith.constant 0 : index
    %c0_0 = arith.constant 0 : index
    %0 = vector.load %arg2[%c0, %c0_0] : memref<1x128xbf16, #tpu.memory_space<vmem>>, vector<1x128xbf16>
    %c0_1 = arith.constant 0 : index
    %c0_2 = arith.constant 0 : index
    %1 = vector.load %arg1[%c0_1, %c0_2] : memref<4x128xf32, #tpu.memory_space<vmem>>, vector<4x128xf32>
    %2 = arith.extf %0 : vector<1x128xbf16> to vector<1x128xf32>
    %3 = vector.broadcast %2 : vector<1x128xf32> to vector<4x128xf32>
    %4 = arith.mulf %1, %3 : vector<4x128xf32>
    %cst = arith.constant 0.000000e+00 : f32
    %5 = vector.broadcast %cst : f32 to vector<4x128xf32>
    %c0_3 = arith.constant 0 : index
    %c0_4 = arith.constant 0 : index
    %6 = vector.load %arg6[%c0_3, %c0_4] : memref<4x384xf32, #tpu.memory_space<vmem>>, vector<4x128xf32>
    tpu.vector_store %arg6[%c0_3, %c0_4], %5 {strides = array<i32>} : memref<4x384xf32, #tpu.memory_space<vmem>>, vector<4x128xf32>,
    %cst_5 = arith.constant 0.000000e+00 : f32
    %7 = vector.broadcast %cst_5 : f32 to vector<4x128xf32>
    %c0_6 = arith.constant 0 : index
    %c256 = arith.constant 256 : index
    %8 = vector.load %arg6[%c0_6, %c256] : memref<4x384xf32, #tpu.memory_space<vmem>>, vector<4x128xf32>
    tpu.vector_store %arg6[%c0_6, %c256], %7 {strides = array<i32>} : memref<4x384xf32, #tpu.memory_space<vmem>>, vector<4x128xf32>,
    %c0_7 = arith.constant 0 : index
    %c128 = arith.constant 128 : index
    %9 = vector.load %arg6[%c0_7, %c128] : memref<4x384xf32, #tpu.memory_space<vmem>>, vector<4x128xf32>
    tpu.vector_store %arg6[%c0_7, %c128], %4 {strides = array<i32>} : memref<4x384xf32, #tpu.memory_space<vmem>>, vector<4x128xf32>,
    %c0_8 = arith.constant 0 : index
    %c126 = arith.constant 126 : index
    %10 = vector.load %arg6[%c0_8, %c126] : memref<4x384xf32, #tpu.memory_space<vmem>>, vector<4x128xf32>
    %c0_9 = arith.constant 0 : index
    %c0_10 = arith.constant 0 : index
    %c0_11 = arith.constant 0 : index
    %11 = vector.load %arg3[%c0_9, %c0_10, %c0_11] : memref<3x8x4xf32, #tpu.memory_space<vmem>>, vector<1x8x4xf32>
    %12 = vector.shape_cast %11 : vector<1x8x4xf32> to vector<8x4xf32>
    %cst_12 = arith.constant dense<0.000000e+00> : vector<8x128xf32>
    %13 = tpu.matmul %12, %10, %cst_12 {dimension_numbers = #tpu.dot_dimension_numbers<[1], [0], [0], [1], [0, 0, 1, 1], [], []>} : vector<8x4xf32>, vector<4x128xf32>, vector<8x128xf32> -> vector<8x128xf32>
    %c0_13 = arith.constant 0 : index
    %c128_14 = arith.constant 128 : index
    %14 = vector.load %arg6[%c0_13, %c128_14] : memref<4x384xf32, #tpu.memory_space<vmem>>, vector<4x128xf32>
    %c1 = arith.constant 1 : index
    %c0_15 = arith.constant 0 : index
    %c0_16 = arith.constant 0 : index
    %15 = vector.load %arg3[%c1, %c0_15, %c0_16] : memref<3x8x4xf32, #tpu.memory_space<vmem>>, vector<1x8x4xf32>
    %16 = vector.shape_cast %15 : vector<1x8x4xf32> to vector<8x4xf32>
    %cst_17 = arith.constant dense<0.000000e+00> : vector<8x128xf32>
    %17 = tpu.matmul %16, %14, %cst_17 {dimension_numbers = #tpu.dot_dimension_numbers<[1], [0], [0], [1], [0, 0, 1, 1], [], []>} : vector<8x4xf32>, vector<4x128xf32>, vector<8x128xf32> -> vector<8x128xf32>
    %18 = arith.addf %13, %17 : vector<8x128xf32>
    %c0_18 = arith.constant 0 : index
    %c130 = arith.constant 130 : index
    %19 = vector.load %arg6[%c0_18, %c130] : memref<4x384xf32, #tpu.memory_space<vmem>>, vector<4x128xf32>
    %c2 = arith.constant 2 : index
    %c0_19 = arith.constant 0 : index
    %c0_20 = arith.constant 0 : index
    %20 = vector.load %arg3[%c2, %c0_19, %c0_20] : memref<3x8x4xf32, #tpu.memory_space<vmem>>, vector<1x8x4xf32>
    %21 = vector.shape_cast %20 : vector<1x8x4xf32> to vector<8x4xf32>
    %cst_21 = arith.constant dense<0.000000e+00> : vector<8x128xf32>
    %22 = tpu.matmul %21, %19, %cst_21 {dimension_numbers = #tpu.dot_dimension_numbers<[1], [0], [0], [1], [0, 0, 1, 1], [], []>} : vector<8x4xf32>, vector<4x128xf32>, vector<8x128xf32> -> vector<8x128xf32>
    %23 = arith.addf %18, %22 : vector<8x128xf32>
    %c0_22 = arith.constant 0 : index
    %c0_23 = arith.constant 0 : index
    %24 = vector.load %arg4[%c0_22, %c0_23] : memref<8x1xf32, #tpu.memory_space<vmem>>, vector<8x1xf32>
    %25 = vector.broadcast %24 : vector<8x1xf32> to vector<8x128xf32>
    %26 = arith.addf %23, %25 : vector<8x128xf32>
    %27 = arith.extf %0 : vector<1x128xbf16> to vector<1x128xf32>
    %28 = vector.broadcast %27 : vector<1x128xf32> to vector<8x128xf32>
    %29 = arith.mulf %26, %28 : vector<8x128xf32>
    %c0_24 = arith.constant 0 : index
    %c0_25 = arith.constant 0 : index
    %30 = vector.load %arg5[%c0_24, %c0_25] : memref<8x128xf32, #tpu.memory_space<vmem>>, vector<8x128xf32>
    tpu.vector_store %arg5[%c0_24, %c0_25], %29 {strides = array<i32>} : memref<8x128xf32, #tpu.memory_space<vmem>>, vector<8x128xf32>,
    return
  }
  func.func @transform_0(%arg0: i32) -> (i32, i32) {
    %c0_i32 = arith.constant 0 : i32
    %c0_i32_0 = arith.constant 0 : i32
    return %c0_i32, %arg0 : i32, i32
  }
  func.func @transform_1(%arg0: i32) -> (i32, i32) {
    %c0_i32 = arith.constant 0 : i32
    %c0_i32_0 = arith.constant 0 : i32
    return %c0_i32, %arg0 : i32, i32
  }
  func.func @transform_2(%arg0: i32) -> (i32, i32, i32) {
    %c0_i32 = arith.constant 0 : i32
    %c0_i32_0 = arith.constant 0 : i32
    %c0_i32_1 = arith.constant 0 : i32
    %c0_i32_2 = arith.constant 0 : i32
    return %c0_i32, %c0_i32_0, %c0_i32_1 : i32, i32, i32
  }
  func.func @transform_3(%arg0: i32) -> (i32, i32) {
    %c0_i32 = arith.constant 0 : i32
    %c0_i32_0 = arith.constant 0 : i32
    %c0_i32_1 = arith.constant 0 : i32
    return %c0_i32, %c0_i32_0 : i32, i32
  }
  func.func @transform_4(%arg0: i32) -> (i32, i32) {
    %c0_i32 = arith.constant 0 : i32
    %c0_i32_0 = arith.constant 0 : i32
    return %c0_i32, %arg0 : i32, i32
  }
}

</mosaic_0001>

<llo_original>
// kernel: tpu_custom_call.1
$region0: #{tpu_custom_call.1}
  #allocation0 [shape = 'u32[]', space=smem, size = 0x4, offset = 0x4, fixed_abs, tag = 'smem constant byte address 0x4 - core index']
  #allocation1 [shape = 'u32[72,128]{1,0:T(1,128)}', space=vmem, size = 0x9000, scoped, tag = 'internal scratch']
  #allocation2 [shape = 'f32[4,384]{1,0:T(4,128)}', space=vmem, size = 0x1800, scoped, tag = 'scratch operand']
  %s0 = inlined_call_operand.vmem [shape: f32[4,128], index: 0, kind: input, shape index: {}]
  %s1 = inlined_call_operand.vmem [shape: bf16[1,128], index: 1, kind: input, shape index: {}]
  %s2 = inlined_call_operand.vmem [shape: f32[3,8,4], index: 2, kind: input, shape index: {}]
  %s3 = inlined_call_operand.vmem [shape: f32[8,1], index: 3, kind: input, shape index: {}]
  %s4 = inlined_call_operand.hbm [shape: f32[8,128], index: 4, kind: output, shape index: {}]
  %s5 = sld [smem:[#allocation0]]
  $region26: #{tpu_custom_call.1} parent=0
    _
  %s7 = ssub.s32 1, %s5
  %s8 = scalar_select 0, %s7, %s5
  $region1: #{tpu_custom_call.1} parent=0
    #allocation3 [shape = 'u8[4096]{0}', space=vmem, size = 0x1000, scoped, tag = 'output window, operand 0, single buffered']
    #allocation4 [shape = 's32[1]{0}', space=sflag, size = 0x4, scoped, tag = 'scoped memory for tpu_custom_call.1']
    %9 = vsyncpa [#allocation4], 0
    // Predicated region
    $region2: #{tpu_custom_call.1} parent=1 // pred_check
      _
    $region3: #{tpu_custom_call.1} parent=1 // pred_check_branch
      %11 = sbr.rel (0) target = $region5
    $region4: #{tpu_custom_call.1} parent=1 // pred_region
      _
    $region5: #{tpu_custom_call.1} parent=1 // pred_fallthru
      _
    // Predicated region
    $region6: #{tpu_custom_call.1} parent=1 // pred_check
      _
    $region7: #{tpu_custom_call.1} parent=1 // pred_check_branch
      %13 = sbr.rel (0) target = $region9
    $region8: #{tpu_custom_call.1} parent=1 // pred_region
      _
    $region9: #{tpu_custom_call.1} parent=1 // pred_fallthru
      _
    // Predicated region
    $region10: #{tpu_custom_call.1} parent=1 // pred_check
      _
    $region11: #{tpu_custom_call.1} parent=1 // pred_check_branch
      %15 = sbr.rel (0) target = $region13
    $region12: #{tpu_custom_call.1} parent=1 // pred_region
      _
    $region13: #{tpu_custom_call.1} parent=1 // pred_fallthru
      _
    // Predicated region
    $region14: #{tpu_custom_call.1} parent=1 // pred_check
      _
    $region15: #{tpu_custom_call.1} parent=1 // pred_check_branch
      %17 = sbr.rel (0) target = $region17
    $region16: #{tpu_custom_call.1} parent=1 // pred_region
      _
    $region17: #{tpu_custom_call.1} parent=1 // pred_fallthru
      _
    %v18 = vld [vmem:[%s1] sm:$0x1]
    %v19 = vld [vmem:[%s0] sm:$0xf]
    %v20 = vunpack.c.l.bf16 %v18
    %v21 = vperm.slane %v20, 0
    %v22 = vmul.f32 %v19, %v21
    %23 = vst [vmem:[#allocation2] sm:$0xf] 0.0
    %24 = vst [vmem:[#allocation2 + $0x8] sm:$0xf] 0.0
    %25 = vst [vmem:[#allocation2 + $0x4] sm:$0xf] %v22
    %v26 = vld [vmem:[#allocation2] sm:$0xff]
    %v27 = vld [vmem:[%s2] sm:$0xff]
    %v28 = vld [vmem:[#allocation2 + $0x4] sm:$0xf]
    %s29 = scalar_lea.vmem %s2, 8
    %v30 = vld [vmem:[%s29] sm:$0xff]
    %vm31 = vcmask 31744
    %v33 = vsel %vm31, %v30, 0
    %vm35 = vcmask 1043456
    %v37 = vsel %vm35, %v28, 0
    %39 = vmatpush.msra.mxu0 0.0
    %40 = vmatpush.msra.mxu0 0.0
    %41 = vmatpush.msra.mxu0 0.0
    %42 = vmatpush.msra.mxu0 0.0
    %43 = vmatpush.msra.mxu0 0.0
    %44 = vmatpush.msra.mxu0 0.0
    %45 = vmatpush.msra.mxu0 0.0
    %46 = vmatpush.msra.mxu0 0.0
    %47 = vmatpush.msra.mxu0 0.0
    %48 = vmatpush.msra.mxu0 0.0
    %49 = vmatpush.msra.mxu0 0.0
    %50 = vmatpush.msra.mxu0 0.0
    %51 = vmatpush.msra.mxu0 0.0
    %52 = vmatpush.msra.mxu0 0.0
    %53 = vmatpush.msra.mxu0 0.0
    %54 = vmatpush.msra.mxu0 %v37
    %55 = vmatmul.f32.gmra.mxu0 %v33
    %v56 = vpop.f32.mrf.mxu0
    %v57 = vadd.f32 0.0, %v56
    %58 = vdwg.mxu0
    %60 = vst [vmem:[#allocation1] ss:$2 sm:$0xff] %v26
    %v61 = vld.sshfl [vmem:[#allocation1] sm:$0xff pattern:$0x75316420]
    %v62 = vld.sshfl [vmem:[#allocation1 + $0x8] sm:$0xff pattern:$0x75316420]
    %63 = vrot.lane.b32.xlu0 %v61, 2
    %v64 = vpop.permute.xlu0 %63
    %65 = vrot.lane.b32.xlu0 %v62, 2
    %v66 = vpop.permute.xlu0 %65
    %vm67 = vcmask 15360
    %v68 = vsel %vm67, %v64, %v66
    %v70 = vsel %vm31, %v27, 0
    %v72 = vsel %vm35, %v68, 0
    %74 = vmatpush.msra.mxu0 0.0
    %75 = vmatpush.msra.mxu0 0.0
    %76 = vmatpush.msra.mxu0 0.0
    %77 = vmatpush.msra.mxu0 0.0
    %78 = vmatpush.msra.mxu0 0.0
    %79 = vmatpush.msra.mxu0 0.0
    %80 = vmatpush.msra.mxu0 0.0
    %81 = vmatpush.msra.mxu0 0.0
    %82 = vmatpush.msra.mxu0 0.0
    %83 = vmatpush.msra.mxu0 0.0
    %84 = vmatpush.msra.mxu0 0.0
    %85 = vmatpush.msra.mxu0 0.0
    %86 = vmatpush.msra.mxu0 0.0
    %87 = vmatpush.msra.mxu0 0.0
    %88 = vmatpush.msra.mxu0 0.0
    %89 = vmatpush.msra.mxu0 %v72
    %90 = vmatmul.f32.gmra.mxu0 %v70
    %v91 = vpop.f32.mrf.mxu0
    %v92 = vadd.f32 %v57, %v91
    %93 = vdwg.mxu0
    %v94 = vld [vmem:[#allocation2 + $0x4] sm:$0xff]
    %s95 = scalar_lea.vmem %s2, 16
    %v96 = vld [vmem:[%s95] sm:$0xff]
    %98 = vst [vmem:[#allocation1] ss:$2 sm:$0xff] %v94
    %v99 = vld.sshfl [vmem:[#allocation1] sm:$0xff pattern:$0x75316420]
    %v100 = vld.sshfl [vmem:[#allocation1 + $0x8] sm:$0xff pattern:$0x75316420]
    %101 = vrot.lane.b32.xlu0 %v99, 126
    %v102 = vpop.permute.xlu0 %101
    %103 = vrot.lane.b32.xlu0 %v100, 126
    %v104 = vpop.permute.xlu0 %103
    %vm105 = vcmask 1031168
    %v106 = vsel %vm105, %v102, %v104
    %v108 = vsel %vm31, %v96, 0
    %v110 = vsel %vm35, %v106, 0
    %112 = vmatpush.msra.mxu0 0.0
    %113 = vmatpush.msra.mxu0 0.0
    %114 = vmatpush.msra.mxu0 0.0
    %115 = vmatpush.msra.mxu0 0.0
    %116 = vmatpush.msra.mxu0 0.0
    %117 = vmatpush.msra.mxu0 0.0
    %118 = vmatpush.msra.mxu0 0.0
    %119 = vmatpush.msra.mxu0 0.0
    %120 = vmatpush.msra.mxu0 0.0
    %121 = vmatpush.msra.mxu0 0.0
    %122 = vmatpush.msra.mxu0 0.0
    %123 = vmatpush.msra.mxu0 0.0
    %124 = vmatpush.msra.mxu0 0.0
    %125 = vmatpush.msra.mxu0 0.0
    %126 = vmatpush.msra.mxu0 0.0
    %127 = vmatpush.msra.mxu0 %v110
    %128 = vmatmul.f32.gmra.mxu0 %v108
    %v129 = vpop.f32.mrf.mxu0
    %v130 = vadd.f32 0.0, %v129
    %131 = vdwg.mxu0
    %v132 = vadd.f32 %v92, %v130
    %v133 = vld [vmem:[%s3] sm:$0xff]
    %135 = vset.pattern.permute.xlu0 0
    %136 = vperm.xlu0 %135, %v133
    %v137 = vpop.permute.xlu0 %136
    %v139 = vadd.f32 %v132, %v137
    %v140 = vmul.f32 %v139, %v21
    %141 = vst [vmem:[#allocation3] sm:$0xff] %v140
    // Predicated region
    $region18: #{tpu_custom_call.1} parent=1 // pred_check
      _
    $region19: #{tpu_custom_call.1} parent=1 // pred_check_branch
      %143 = sbr.rel (0) target = $region21
    $region20: #{tpu_custom_call.1} parent=1 // pred_region
      %145 = vsyncadd [#allocation4], 0
      %s147 = sshll.u32 [#allocation3], 4
      %s148 = int_to_ptr.vmem [resolvable:$true] %s147
      %s149 = sshll.u32 %s4, 4
      %s150 = int_to_ptr.hbm [resolvable:$true] %s149
      %152 = dma.vmem_to_hbm [thread:$0]  %s148, 128, %s150, [#allocation4]
    $region21: #{tpu_custom_call.1} parent=1 // pred_fallthru
      _
    // Predicated region
    $region22: #{tpu_custom_call.1} parent=1 // pred_check
      _
    $region23: #{tpu_custom_call.1} parent=1 // pred_check_branch
      %154 = sbr.rel (0) target = $region25
    $region24: #{tpu_custom_call.1} parent=1 // pred_region
      %156 = dma.done [#allocation4], 128
    $region25: #{tpu_custom_call.1} parent=1 // pred_fallthru
      _
    %157 = vsyncpa [#allocation4], 1

</llo_original>
